<compile_context>
chip_gen: v7x
topology: tpu7x:2x2x1
jax: 0.10.0
libtpu: 0.0.40
codegen_flags: <defaults>
</compile_context>

<pallas_src>
import functools

import jax
import jax.numpy as jnp
from jax import lax
from jax.experimental import pallas as pl
from jax.experimental.pallas import tpu as pltpu


def _head_kernel(x_ref, wqkv_ref, o_ref, *, approx_recip: bool):
    # x_ref:    (B, T, C) -- full batch, single grid step
    # wqkv_ref: (C, 3H)   fused weight [Q | K | V]
    # o_ref:    (B, T, H)
    B, T, C = x_ref.shape
    H = o_ref.shape[-1]

    # Fused QKV projection for the whole batch: one (B*T, C) x (C, 3H) MXU
    # matmul with f32 accumulation (operands stay in input dtype).
    x2d = x_ref[...].reshape(B * T, C)
    w = wqkv_ref[...]
    qkv = jnp.dot(x2d, w, preferred_element_type=jnp.float32)      # (B*T, 3H)

    # Fold the C**-0.5 scale (C == n_embed, matching PyTorch) into q:
    # a (B*T, H) multiply instead of a (B, T, T) one, off the MXU result path.
    scale = jnp.float32(C) ** jnp.float32(-0.5)
    q = (qkv[:, 0:H] * scale).reshape(B, T, H)
    k = qkv[:, H:2 * H].reshape(B, T, H)
    v = qkv[:, 2 * H:3 * H].reshape(B, T, H)

    # Batched attention scores: contract the H axis of q and k directly
    # (trans_b semantics, no explicit k transpose written here).
    wei = lax.dot_general(
        q, k,
        dimension_numbers=(((2,), (2,)), ((0,), (0,))),
        preferred_element_type=jnp.float32)                        # (B, T, T)

    # Causal mask, built once per call; large finite negative (NaN-safe).
    row = lax.broadcasted_iota(jnp.int32, (T, T), 0)
    col = lax.broadcasted_iota(jnp.int32, (T, T), 1)
    wei = jnp.where((col <= row)[None, :, :], wei, jnp.float32(-1e30))

    # Numerically-stable softmax in f32 (v5e has no bf16 VPU/EUP path).
    wei_max = jnp.max(wei, axis=-1, keepdims=True)
    e = jnp.exp(wei - wei_max)
    denom = jnp.sum(e, axis=-1, keepdims=True)
    if approx_recip:
        p = e * pl.reciprocal(denom, approx=True)                  # EUP slot
    else:
        p = e / denom

    # Weighted sum of values; single contiguous (B, T, H) output store.
    out = lax.dot_general(
        p.astype(x_ref.dtype), v.astype(x_ref.dtype),
        dimension_numbers=(((2,), (1,)), ((0,), (0,))),
        preferred_element_type=jnp.float32)                        # (B, T, H)
    o_ref[...] = out.astype(o_ref.dtype)


def fuse_qkv_weights(wq, wk, wv):
    """Fuse the three (C, H) projection weights ONCE (at parameter init)."""
    return jnp.concatenate([wq, wk, wv], axis=1)                   # (C, 3H)


def head_forward(x, w_qkv, *, approx_recip=True):
    """x: (B, T, C); w_qkv: (C, 3H) from fuse_qkv_weights. Returns (B, T, H)."""
    B, T, C = x.shape
    H = w_qkv.shape[1] // 3

    kernel = functools.partial(_head_kernel, approx_recip=approx_recip)
    return pl.pallas_call(
        kernel,
        out_shape=jax.ShapeDtypeStruct((B, T, H), x.dtype),
        # Single grid step: the whole problem fits comfortably in VMEM at toy
        # GPT shapes; avoids per-batch pipeline-setup overhead entirely.
        grid=(1,),
        in_specs=[
            pl.BlockSpec((B, T, C), lambda i: (0, 0, 0)),
            pl.BlockSpec((C, 3 * H), lambda i: (0, 0)),
        ],
        out_specs=pl.BlockSpec((B, T, H), lambda i: (0, 0, 0)),
        compiler_params=pltpu.CompilerParams(
            dimension_semantics=("arbitrary",)),
    )(x, w_qkv)


def reference_forward(x, wk, wq, wv):
    """Pure-JAX reference for correctness checking."""
    B, T, C = x.shape
    k = x @ wk
    q = x @ wq
    v = x @ wv
    wei = (q @ jnp.swapaxes(k, -2, -1)) * (C ** -0.5)
    mask = jnp.tril(jnp.ones((T, T), dtype=bool))
    wei = jnp.where(mask, wei, -jnp.inf)
    wei = jax.nn.softmax(wei, axis=-1)
    return wei @ v


if __name__ == "__main__":
    # Small shapes consistent with the module:
    #   batch B=2, seq T=8 (<= block_size), n_embed C=32, head_size H=16
    B, T, C, H = 2, 8, 32, 16

    key = jax.random.PRNGKey(0)
    kx, kk, kq, kv = jax.random.split(key, 4)

    x = jax.random.normal(kx, (B, T, C), dtype=jnp.float32)
    # Deterministic linear weights, stored as (C, H) == Linear.weight.T
    wk = jax.random.normal(kk, (C, H), dtype=jnp.float32) * (1.0 / C ** 0.5)
    wq = jax.random.normal(kq, (C, H), dtype=jnp.float32) * (1.0 / C ** 0.5)
    wv = jax.random.normal(kv, (C, H), dtype=jnp.float32) * (1.0 / C ** 0.5)

    # Fuse once (parameter-init time), not per forward call.
    w_qkv = fuse_qkv_weights(wq, wk, wv)

    out = head_forward(x, w_qkv)
    out = jax.block_until_ready(out)

    ref = reference_forward(x, wk, wq, wv)
    assert out.shape == (B, T, H), out.shape
    # Tolerance relaxed vs. exact math because of pl.reciprocal(approx=True).
    assert jnp.allclose(out, ref, atol=2e-3, rtol=2e-3), \
        float(jnp.max(jnp.abs(out - ref)))

    print("KERNEL_OK")
</pallas_src>

<mosaic_0001>
module attributes {stable_mosaic.version = 11 : i64} {
  func.func @_head_kernel(%arg0: i32, %arg1: memref<2x8x32xf32, #tpu.memory_space<vmem>>, %arg2: memref<32x48xf32, #tpu.memory_space<vmem>>, %arg3: memref<2x8x16xf32, #tpu.memory_space<vmem>>) attributes {dimension_semantics = [#tpu.dimension_semantics<arbitrary>], iteration_bounds = array<i64: 1>, scalar_prefetch = 0 : i64, scratch_operands = 0 : i64, tpu.core_type = #tpu.core_type<tc>, window_params = [{pipeline_mode = #tpu.pipeline_mode<synchronous>, transform_indices = @transform_0, window_bounds = array<i64: 2, 8, 32>}, {pipeline_mode = #tpu.pipeline_mode<synchronous>, transform_indices = @transform_1, window_bounds = array<i64: 32, 48>}, {pipeline_mode = #tpu.pipeline_mode<synchronous>, transform_indices = @transform_2, window_bounds = array<i64: 2, 8, 16>}]} {
    %c0 = arith.constant 0 : index
    %c0_0 = arith.constant 0 : index
    %c0_1 = arith.constant 0 : index
    %0 = vector.load %arg1[%c0, %c0_0, %c0_1] : memref<2x8x32xf32, #tpu.memory_space<vmem>>, vector<2x8x32xf32>
    %1 = vector.shape_cast %0 : vector<2x8x32xf32> to vector<16x32xf32>
    %c0_2 = arith.constant 0 : index
    %c0_3 = arith.constant 0 : index
    %2 = vector.load %arg2[%c0_2, %c0_3] : memref<32x48xf32, #tpu.memory_space<vmem>>, vector<32x48xf32>
    %cst = arith.constant dense<0.000000e+00> : vector<16x48xf32>
    %3 = tpu.matmul %1, %2, %cst {dimension_numbers = #tpu.dot_dimension_numbers<[1], [0], [0], [1], [0, 0, 1, 1], [], []>} : vector<16x32xf32>, vector<32x48xf32>, vector<16x48xf32> -> vector<16x48xf32>
    %cst_4 = arith.constant 3.200000e+01 : f32
    %cst_5 = arith.constant -5.000000e-01 : f32
    %4 = math.powf %cst_4, %cst_5 : f32
    %5 = vector.extract_strided_slice %3 {offsets = [0, 0], sizes = [16, 16], strides = [1, 1]} : vector<16x48xf32> to vector<16x16xf32>
    %6 = vector.broadcast %4 : f32 to vector<16x16xf32>
    %7 = arith.mulf %5, %6 : vector<16x16xf32>
    %8 = vector.shape_cast %7 : vector<16x16xf32> to vector<2x8x16xf32>
    %9 = vector.extract_strided_slice %3 {offsets = [0, 16], sizes = [16, 16], strides = [1, 1]} : vector<16x48xf32> to vector<16x16xf32>
    %10 = vector.shape_cast %9 : vector<16x16xf32> to vector<2x8x16xf32>
    %11 = vector.extract_strided_slice %3 {offsets = [0, 32], sizes = [16, 16], strides = [1, 1]} : vector<16x48xf32> to vector<16x16xf32>
    %12 = vector.shape_cast %11 : vector<16x16xf32> to vector<2x8x16xf32>
    %cst_6 = arith.constant dense<0.000000e+00> : vector<2x8x8xf32>
    %13 = tpu.matmul %8, %10, %cst_6 {dimension_numbers = #tpu.dot_dimension_numbers<[2], [2], [1], [1], [0, 0, 0, 1, 1, 1], [0], [0]>} : vector<2x8x16xf32>, vector<2x8x16xf32>, vector<2x8x8xf32> -> vector<2x8x8xf32>
    %14 = tpu.iota {dimensions = array<i32: 0>} : vector<8x8xi32>
    %15 = tpu.iota {dimensions = array<i32: 1>} : vector<8x8xi32>
    %16 = arith.cmpi sle, %15, %14 : vector<8x8xi32>
    %17 = vector.shape_cast %16 : vector<8x8xi1> to vector<1x8x8xi1>
    %cst_7 = arith.constant -1.000000e+30 : f32
    %18 = vector.shape_cast %17 : vector<1x8x8xi1> to vector<1x8x8xi1>
    %19 = vector.broadcast %18 : vector<1x8x8xi1> to vector<2x8x8xi1>
    %20 = vector.broadcast %cst_7 : f32 to vector<2x8x8xf32>
    %21 = arith.select %19, %13, %20 : vector<2x8x8xi1>, vector<2x8x8xf32>
    %cst_8 = arith.constant dense<0xFF800000> : vector<2x8xf32>
    %22 = vector.multi_reduction <maximumf>, %21, %cst_8 [2] : vector<2x8x8xf32> to vector<2x8xf32>
    %23 = vector.shape_cast %22 : vector<2x8xf32> to vector<2x8x1xf32>
    %24 = vector.broadcast %23 : vector<2x8x1xf32> to vector<2x8x8xf32>
    %25 = arith.subf %21, %24 : vector<2x8x8xf32>
    %26 = math.exp %25 : vector<2x8x8xf32>
    %cst_9 = arith.constant dense<0.000000e+00> : vector<2x8xf32>
    %27 = vector.multi_reduction <add>, %26, %cst_9 [2] : vector<2x8x8xf32> to vector<2x8xf32>
    %28 = vector.shape_cast %27 : vector<2x8xf32> to vector<2x8x1xf32>
    %29 = tpu.reciprocal %28 {approx = true} : vector<2x8x1xf32> -> vector<2x8x1xf32>
    %30 = vector.broadcast %29 : vector<2x8x1xf32> to vector<2x8x8xf32>
    %31 = arith.mulf %26, %30 : vector<2x8x8xf32>
    %cst_10 = arith.constant dense<0.000000e+00> : vector<2x8x16xf32>
    %32 = tpu.matmul %31, %12, %cst_10 {dimension_numbers = #tpu.dot_dimension_numbers<[2], [1], [1], [2], [0, 0, 0, 1, 1, 2], [0], [0]>} : vector<2x8x8xf32>, vector<2x8x16xf32>, vector<2x8x16xf32> -> vector<2x8x16xf32>
    %c0_11 = arith.constant 0 : index
    %c0_12 = arith.constant 0 : index
    %c0_13 = arith.constant 0 : index
    %33 = vector.load %arg3[%c0_11, %c0_12, %c0_13] : memref<2x8x16xf32, #tpu.memory_space<vmem>>, vector<2x8x16xf32>
    tpu.vector_store %arg3[%c0_11, %c0_12, %c0_13], %32 {strides = array<i32>} : memref<2x8x16xf32, #tpu.memory_space<vmem>>, vector<2x8x16xf32>,
    return
  }
  func.func @transform_0(%arg0: i32) -> (i32, i32, i32) {
    %c0_i32 = arith.constant 0 : i32
    %c0_i32_0 = arith.constant 0 : i32
    %c0_i32_1 = arith.constant 0 : i32
    %c0_i32_2 = arith.constant 0 : i32
    return %c0_i32, %c0_i32_0, %c0_i32_1 : i32, i32, i32
  }
  func.func @transform_1(%arg0: i32) -> (i32, i32) {
    %c0_i32 = arith.constant 0 : i32
    %c0_i32_0 = arith.constant 0 : i32
    %c0_i32_1 = arith.constant 0 : i32
    return %c0_i32, %c0_i32_0 : i32, i32
  }
  func.func @transform_2(%arg0: i32) -> (i32, i32, i32) {
    %c0_i32 = arith.constant 0 : i32
    %c0_i32_0 = arith.constant 0 : i32
    %c0_i32_1 = arith.constant 0 : i32
    %c0_i32_2 = arith.constant 0 : i32
    return %c0_i32, %c0_i32_0, %c0_i32_1 : i32, i32, i32
  }
}

</mosaic_0001>

<llo_original>
// kernel: tpu_custom_call.1
$region0: #{tpu_custom_call.1}
  #allocation0 [shape = 'u32[]', space=smem, size = 0x4, offset = 0x4, fixed_abs, tag = 'smem constant byte address 0x4 - core index']
  #allocation1 [shape = 'u32[144,128]{1,0:T(1,128)}', space=vmem, size = 0x12000, scoped, tag = 'internal scratch']
  %s0 = inlined_call_operand.hbm [shape: f32[2,8,32], index: 0, kind: input, shape index: {}]
  %s1 = inlined_call_operand.hbm [shape: f32[32,48], index: 1, kind: input, shape index: {}]
  %s2 = inlined_call_operand.hbm [shape: f32[2,8,16], index: 2, kind: output, shape index: {}]
  %s3 = sld [smem:[#allocation0]]
  $region26: #{tpu_custom_call.1} parent=0
    _
  %s5 = ssub.s32 1, %s3
  %s6 = scalar_select 0, %s5, %s3
  $region1: #{tpu_custom_call.1} parent=0
    #allocation2 [shape = 'u8[8192]{0}', space=vmem, size = 0x2000, scoped, tag = 'input window, operand 0, single buffered']
    #allocation3 [shape = 's32[1]{0}', space=sflag, size = 0x4, scoped, tag = 'scoped memory for tpu_custom_call.1']
    #allocation4 [shape = 's32[1]{0}', space=sflag, size = 0x4, scoped, tag = 'scoped memory for tpu_custom_call.1']
    #allocation5 [shape = 'u8[16384]{0}', space=vmem, size = 0x4000, scoped, tag = 'input window, operand 1, single buffered']
    #allocation6 [shape = 's32[1]{0}', space=sflag, size = 0x4, scoped, tag = 'scoped memory for tpu_custom_call.1']
    #allocation7 [shape = 'u8[8192]{0}', space=vmem, size = 0x2000, scoped, tag = 'output window, operand 0, single buffered']
    %7 = vsyncpa [#allocation3], 0
    %8 = vsyncpa [#allocation6], 0
    %9 = vsyncpa [#allocation4], 0
    // Predicated region
    $region2: #{tpu_custom_call.1} parent=1 // pred_check
      _
    $region3: #{tpu_custom_call.1} parent=1 // pred_check_branch
      %11 = sbr.rel (0) target = $region5
    $region4: #{tpu_custom_call.1} parent=1 // pred_region
      %s13 = ssub.s32 256, 256
      %14 = vsyncadd [#allocation3], %s13
      %s15 = sshll.u32 [#allocation2], 4
      %s16 = int_to_ptr.vmem [resolvable:$true] %s15
      %21 = dma.hbm_to_vmem [thread:$0]  %s0, 256, %s16, [#allocation3], 128, 128, 8
    $region5: #{tpu_custom_call.1} parent=1 // pred_fallthru
      _
    // Predicated region
    $region6: #{tpu_custom_call.1} parent=1 // pred_check
      _
    $region7: #{tpu_custom_call.1} parent=1 // pred_check_branch
      %23 = sbr.rel (0) target = $region9
    $region8: #{tpu_custom_call.1} parent=1 // pred_region
      %s25 = ssub.s32 512, 512
      %26 = vsyncadd [#allocation6], %s25
      %s27 = sshll.u32 [#allocation5], 4
      %s28 = int_to_ptr.vmem [resolvable:$true] %s27
      %33 = dma.hbm_to_vmem [thread:$0]  %s1, 512, %s28, [#allocation6], 128, 128, 8
    $region9: #{tpu_custom_call.1} parent=1 // pred_fallthru
      _
    // Predicated region
    $region10: #{tpu_custom_call.1} parent=1 // pred_check
      _
    $region11: #{tpu_custom_call.1} parent=1 // pred_check_branch
      %35 = sbr.rel (0) target = $region13
    $region12: #{tpu_custom_call.1} parent=1 // pred_region
      %36 = dma.done [#allocation3], 256
    $region13: #{tpu_custom_call.1} parent=1 // pred_fallthru
      _
    // Predicated region
    $region14: #{tpu_custom_call.1} parent=1 // pred_check
      _
    $region15: #{tpu_custom_call.1} parent=1 // pred_check_branch
      %38 = sbr.rel (0) target = $region17
    $region16: #{tpu_custom_call.1} parent=1 // pred_region
      %39 = dma.done [#allocation6], 512
    $region17: #{tpu_custom_call.1} parent=1 // pred_fallthru
      _
    %v40 = vld [vmem:[#allocation2] sm:$0xff]
    %v41 = vld [vmem:[#allocation2 + $0x8] sm:$0xff]
    %v42 = vld [vmem:[#allocation5] sm:$0xff]
    %v43 = vld [vmem:[#allocation5 + $0x8] sm:$0xff]
    %v44 = vld [vmem:[#allocation5 + $0x10] sm:$0xff]
    %v45 = vld [vmem:[#allocation5 + $0x18] sm:$0xff]
    %vm46 = vcmask 261120
    %v48 = vsel %vm46, %v40, 0
    %v51 = vsel %vm46, %v41, 0
    %53 = vmatprep.subr.mxu0 0.0
    %54 = vmatpush1.msra.mxu0 %v42
    %55 = vmatprep.subr.mxu0 0.0
    %56 = vmatpush1.msra.mxu0 %v43
    %57 = vmatprep.subr.mxu0 0.0
    %58 = vmatpush1.msra.mxu0 %v44
    %59 = vmatprep.subr.mxu0 0.0
    %60 = vmatpush1.msra.mxu0 %v45
    %61 = vmatprep.subr.mxu0 0.0
    %62 = vmatpush1.msra.mxu0 0.0
    %63 = vmatprep.subr.mxu0 0.0
    %64 = vmatpush1.msra.mxu0 0.0
    %65 = vmatprep.subr.mxu0 0.0
    %66 = vmatpush1.msra.mxu0 0.0
    %67 = vmatprep.subr.mxu0 0.0
    %68 = vmatpush1.msra.mxu0 0.0
    %69 = vmatprep.subr.mxu0 0.0
    %70 = vmatpush1.msra.mxu0 0.0
    %71 = vmatprep.subr.mxu0 0.0
    %72 = vmatpush1.msra.mxu0 0.0
    %73 = vmatprep.subr.mxu0 0.0
    %74 = vmatpush1.msra.mxu0 0.0
    %75 = vmatprep.subr.mxu0 0.0
    %76 = vmatpush1.msra.mxu0 0.0
    %77 = vmatprep.subr.mxu0 0.0
    %78 = vmatpush1.msra.mxu0 0.0
    %79 = vmatprep.subr.mxu0 0.0
    %80 = vmatpush1.msra.mxu0 0.0
    %81 = vmatprep.subr.mxu0 0.0
    %82 = vmatpush1.msra.mxu0 0.0
    %83 = vmatprep.subr.mxu0 0.0
    %84 = vmatpush1.msra.mxu0 0.0
    %85 = vmatprep.subr.mxu0 0.0
    %86 = vmatpush1.msra.mxu0 0.0
    %87 = vmatprep.subr.mxu0 0.0
    %88 = vmatpush1.msra.mxu0 0.0
    %89 = vmatprep.subr.mxu0 0.0
    %90 = vmatpush1.msra.mxu0 0.0
    %91 = vmatprep.subr.mxu0 0.0
    %92 = vmatpush1.msra.mxu0 0.0
    %93 = vmatprep.subr.mxu0 0.0
    %94 = vmatpush1.msra.mxu0 0.0
    %95 = vmatprep.subr.mxu0 0.0
    %96 = vmatpush1.msra.mxu0 0.0
    %97 = vmatprep.subr.mxu0 0.0
    %98 = vmatpush1.msra.mxu0 0.0
    %99 = vmatprep.subr.mxu0 0.0
    %100 = vmatpush1.msra.mxu0 0.0
    %101 = vmatprep.subr.mxu0 0.0
    %102 = vmatpush1.msra.mxu0 0.0
    %103 = vmatprep.subr.mxu0 0.0
    %104 = vmatpush1.msra.mxu0 0.0
    %105 = vmatprep.subr.mxu0 0.0
    %106 = vmatpush1.msra.mxu0 0.0
    %107 = vmatprep.subr.mxu0 0.0
    %108 = vmatpush1.msra.mxu0 0.0
    %109 = vmatprep.subr.mxu0 0.0
    %110 = vmatpush1.msra.mxu0 0.0
    %111 = vmatprep.subr.mxu0 0.0
    %112 = vmatpush1.msra.mxu0 0.0
    %113 = vmatprep.subr.mxu0 0.0
    %114 = vmatpush1.msra.mxu0 0.0
    %115 = vmatprep.subr.mxu0 0.0
    %116 = vmatpush1.msra.mxu0 0.0
    %117 = vmatprep.mubr.f32.mxu0 0.0
    %118 = vmatmul.mubr.f32.gmra.mrb[0].mxu0 %v48
    %v119 = vpop.f32.mrb[0].mxu0
    %v120 = vadd.f32 0.0, %v119
    %v121 = vpop.f32.mrb[0].mxu0
    %122 = vmatprep.mubr.f32.mxu0 0.0
    %123 = vmatmul.mubr.f32.gmra.mrb[0].mxu0 %v51
    %v124 = vpop.f32.mrb[0].mxu0
    %v125 = vadd.f32 0.0, %v124
    %v126 = vpop.f32.mrb[0].mxu0
    %127 = vdwg.mxu0
    %v128 = vmul.f32 %v120, 0.17677669
    %v129 = vmul.f32 %v125, 0.17677669
    %131 = vrot.lane.b32.xlu0 %v120, 112
    %v132 = vpop.permute.xlu0 %131
    %vm133 = vcmask 130048
    %v135 = vsel %vm133, %v128, 0
    %v137 = vsel %vm133, %v132, 0
    %139 = vmatprep.subr.mxu0 0.0
    %140 = vmatpush1.xpose.msra.mxu0 %v137
    %141 = vmatprep.subr.mxu0 0.0
    %142 = vmatpush1.xpose.msra.mxu0 0.0
    %143 = vmatprep.subr.mxu0 0.0
    %144 = vmatpush1.xpose.msra.mxu0 0.0
    %145 = vmatprep.subr.mxu0 0.0
    %146 = vmatpush1.xpose.msra.mxu0 0.0
    %147 = vmatprep.subr.mxu0 0.0
    %148 = vmatpush1.xpose.msra.mxu0 0.0
    %149 = vmatprep.subr.mxu0 0.0
    %150 = vmatpush1.xpose.msra.mxu0 0.0
    %151 = vmatprep.subr.mxu0 0.0
    %152 = vmatpush1.xpose.msra.mxu0 0.0
    %153 = vmatprep.subr.mxu0 0.0
    %154 = vmatpush1.xpose.msra.mxu0 0.0
    %155 = vmatprep.subr.mxu0 0.0
    %156 = vmatpush1.xpose.msra.mxu0 0.0
    %157 = vmatprep.subr.mxu0 0.0
    %158 = vmatpush1.xpose.msra.mxu0 0.0
    %159 = vmatprep.subr.mxu0 0.0
    %160 = vmatpush1.xpose.msra.mxu0 0.0
    %161 = vmatprep.subr.mxu0 0.0
    %162 = vmatpush1.xpose.msra.mxu0 0.0
    %163 = vmatprep.subr.mxu0 0.0
    %164 = vmatpush1.xpose.msra.mxu0 0.0
    %165 = vmatprep.subr.mxu0 0.0
    %166 = vmatpush1.xpose.msra.mxu0 0.0
    %167 = vmatprep.subr.mxu0 0.0
    %168 = vmatpush1.xpose.msra.mxu0 0.0
    %169 = vmatprep.subr.mxu0 0.0
    %170 = vmatpush1.xpose.msra.mxu0 0.0
    %171 = vmatprep.subr.mxu0 0.0
    %172 = vmatpush1.xpose.msra.mxu0 0.0
    %173 = vmatprep.subr.mxu0 0.0
    %174 = vmatpush1.xpose.msra.mxu0 0.0
    %175 = vmatprep.subr.mxu0 0.0
    %176 = vmatpush1.xpose.msra.mxu0 0.0
    %177 = vmatprep.subr.mxu0 0.0
    %178 = vmatpush1.xpose.msra.mxu0 0.0
    %179 = vmatprep.subr.mxu0 0.0
    %180 = vmatpush1.xpose.msra.mxu0 0.0
    %181 = vmatprep.subr.mxu0 0.0
    %182 = vmatpush1.xpose.msra.mxu0 0.0
    %183 = vmatprep.subr.mxu0 0.0
    %184 = vmatpush1.xpose.msra.mxu0 0.0
    %185 = vmatprep.subr.mxu0 0.0
    %186 = vmatpush1.xpose.msra.mxu0 0.0
    %187 = vmatprep.subr.mxu0 0.0
    %188 = vmatpush1.xpose.msra.mxu0 0.0
    %189 = vmatprep.subr.mxu0 0.0
    %190 = vmatpush1.xpose.msra.mxu0 0.0
    %191 = vmatprep.subr.mxu0 0.0
    %192 = vmatpush1.xpose.msra.mxu0 0.0
    %193 = vmatprep.subr.mxu0 0.0
    %194 = vmatpush1.xpose.msra.mxu0 0.0
    %195 = vmatprep.subr.mxu0 0.0
    %196 = vmatpush1.xpose.msra.mxu0 0.0
    %197 = vmatprep.subr.mxu0 0.0
    %198 = vmatpush1.xpose.msra.mxu0 0.0
    %199 = vmatprep.subr.mxu0 0.0
    %200 = vmatpush1.xpose.msra.mxu0 0.0
    %201 = vmatprep.subr.mxu0 0.0
    %202 = vmatpush1.xpose.msra.mxu0 0.0
    %203 = vmatprep.mubr.f32.mxu0 0.0
    %204 = vmatmul.mubr.f32.gmra.mrb[0].mxu0 %v135
    %v205 = vpop.f32.mrb[0].mxu0
    %v206 = vadd.f32 0.0, %v205
    %v207 = vpop.f32.mrb[0].mxu0
    %208 = vdwg.mxu0
    %210 = vrot.lane.b32.xlu0 %v125, 112
    %v211 = vpop.permute.xlu0 %210
    %v213 = vsel %vm133, %v129, 0
    %v215 = vsel %vm133, %v211, 0
    %217 = vmatprep.subr.mxu0 0.0
    %218 = vmatpush1.xpose.msra.mxu0 %v215
    %219 = vmatprep.subr.mxu0 0.0
    %220 = vmatpush1.xpose.msra.mxu0 0.0
    %221 = vmatprep.subr.mxu0 0.0
    %222 = vmatpush1.xpose.msra.mxu0 0.0
    %223 = vmatprep.subr.mxu0 0.0
    %224 = vmatpush1.xpose.msra.mxu0 0.0
    %225 = vmatprep.subr.mxu0 0.0
    %226 = vmatpush1.xpose.msra.mxu0 0.0
    %227 = vmatprep.subr.mxu0 0.0
    %228 = vmatpush1.xpose.msra.mxu0 0.0
    %229 = vmatprep.subr.mxu0 0.0
    %230 = vmatpush1.xpose.msra.mxu0 0.0
    %231 = vmatprep.subr.mxu0 0.0
    %232 = vmatpush1.xpose.msra.mxu0 0.0
    %233 = vmatprep.subr.mxu0 0.0
    %234 = vmatpush1.xpose.msra.mxu0 0.0
    %235 = vmatprep.subr.mxu0 0.0
    %236 = vmatpush1.xpose.msra.mxu0 0.0
    %237 = vmatprep.subr.mxu0 0.0
    %238 = vmatpush1.xpose.msra.mxu0 0.0
    %239 = vmatprep.subr.mxu0 0.0
    %240 = vmatpush1.xpose.msra.mxu0 0.0
    %241 = vmatprep.subr.mxu0 0.0
    %242 = vmatpush1.xpose.msra.mxu0 0.0
    %243 = vmatprep.subr.mxu0 0.0
    %244 = vmatpush1.xpose.msra.mxu0 0.0
    %245 = vmatprep.subr.mxu0 0.0
    %246 = vmatpush1.xpose.msra.mxu0 0.0
    %247 = vmatprep.subr.mxu0 0.0
    %248 = vmatpush1.xpose.msra.mxu0 0.0
    %249 = vmatprep.subr.mxu0 0.0
    %250 = vmatpush1.xpose.msra.mxu0 0.0
    %251 = vmatprep.subr.mxu0 0.0
    %252 = vmatpush1.xpose.msra.mxu0 0.0
    %253 = vmatprep.subr.mxu0 0.0
    %254 = vmatpush1.xpose.msra.mxu0 0.0
    %255 = vmatprep.subr.mxu0 0.0
    %256 = vmatpush1.xpose.msra.mxu0 0.0
    %257 = vmatprep.subr.mxu0 0.0
    %258 = vmatpush1.xpose.msra.mxu0 0.0
    %259 = vmatprep.subr.mxu0 0.0
    %260 = vmatpush1.xpose.msra.mxu0 0.0
    %261 = vmatprep.subr.mxu0 0.0
    %262 = vmatpush1.xpose.msra.mxu0 0.0
    %263 = vmatprep.subr.mxu0 0.0
    %264 = vmatpush1.xpose.msra.mxu0 0.0
    %265 = vmatprep.subr.mxu0 0.0
    %266 = vmatpush1.xpose.msra.mxu0 0.0
    %267 = vmatprep.subr.mxu0 0.0
    %268 = vmatpush1.xpose.msra.mxu0 0.0
    %269 = vmatprep.subr.mxu0 0.0
    %270 = vmatpush1.xpose.msra.mxu0 0.0
    %271 = vmatprep.subr.mxu0 0.0
    %272 = vmatpush1.xpose.msra.mxu0 0.0
    %273 = vmatprep.subr.mxu0 0.0
    %274 = vmatpush1.xpose.msra.mxu0 0.0
    %275 = vmatprep.subr.mxu0 0.0
    %276 = vmatpush1.xpose.msra.mxu0 0.0
    %277 = vmatprep.subr.mxu0 0.0
    %278 = vmatpush1.xpose.msra.mxu0 0.0
    %279 = vmatprep.subr.mxu0 0.0
    %280 = vmatpush1.xpose.msra.mxu0 0.0
    %281 = vmatprep.mubr.f32.mxu0 0.0
    %282 = vmatmul.mubr.f32.gmra.mrb[0].mxu0 %v213
    %v283 = vpop.f32.mrb[0].mxu0
    %v284 = vadd.f32 0.0, %v283
    %v285 = vpop.f32.mrb[0].mxu0
    %286 = vdwg.mxu0
    %v287 = vlaneseq
    %v288 = vshrl.u32 %v287, 7
    %v289 = vlaneseq
    %v290 = vand.u32 %v289, 127
    %vm291 = vcmp.le.s32.totalorder %v290, %v288
    %v292 = vsel %vm291, 1, 0
    %vm293 = vcmp.eq.s32.totalorder %v292, 1
    %v294 = vsel %vm293, %v206, -1e+30
    %v295 = vsel %vm293, %v284, -1e+30
    %vm296 = vcmask 64512
    %v297 = vsel %vm296, %v294, -inf
    %298 = vmax.xlane.f32.xlu0 %v297
    %v299 = vpop.xlane.xlu0 %298
    %v300 = vsel %vm296, %v295, -inf
    %301 = vmax.xlane.f32.xlu0 %v300
    %v302 = vpop.xlane.xlu0 %301
    %v303 = vsub.f32 %v294, %v299
    %v304 = vsub.f32 %v295, %v302
    %v305 = vmul.f32 %v303, 1.442695
    %v306 = vpow.pop %v305
    %v307 = vmul.f32 %v304, 1.442695
    %v308 = vpow.pop %v307
    %v309 = vsel %vm296, %v306, 0.0
    %310 = vadd.xlane.f32.xlu0 %v309
    %v311 = vpop.xlane.xlu0 %310
    %v312 = vsel %vm296, %v308, 0.0
    %313 = vadd.xlane.f32.xlu0 %v312
    %v314 = vpop.xlane.xlu0 %313
    %v315 = vrcp.pop %v311
    %v316 = vrcp.pop %v314
    %v317 = vmul.f32 %v306, %v315
    %v318 = vmul.f32 %v308, %v316
    %319 = vrot.lane.b32.xlu0 %v120, 96
    %v320 = vpop.permute.xlu0 %319
    %v323 = vsel %vm296, %v317, 0
    %325 = vmatprep.subr.mxu0 0.0
    %326 = vmatpush1.msra.mxu0 %v320
    %327 = vmatprep.subr.mxu0 0.0
    %328 = vmatpush1.msra.mxu0 0.0
    %329 = vmatprep.subr.mxu0 0.0
    %330 = vmatpush1.msra.mxu0 0.0
    %331 = vmatprep.subr.mxu0 0.0
    %332 = vmatpush1.msra.mxu0 0.0
    %333 = vmatprep.subr.mxu0 0.0
    %334 = vmatpush1.msra.mxu0 0.0
    %335 = vmatprep.subr.mxu0 0.0
    %336 = vmatpush1.msra.mxu0 0.0
    %337 = vmatprep.subr.mxu0 0.0
    %338 = vmatpush1.msra.mxu0 0.0
    %339 = vmatprep.subr.mxu0 0.0
    %340 = vmatpush1.msra.mxu0 0.0
    %341 = vmatprep.subr.mxu0 0.0
    %342 = vmatpush1.msra.mxu0 0.0
    %343 = vmatprep.subr.mxu0 0.0
    %344 = vmatpush1.msra.mxu0 0.0
    %345 = vmatprep.subr.mxu0 0.0
    %346 = vmatpush1.msra.mxu0 0.0
    %347 = vmatprep.subr.mxu0 0.0
    %348 = vmatpush1.msra.mxu0 0.0
    %349 = vmatprep.subr.mxu0 0.0
    %350 = vmatpush1.msra.mxu0 0.0
    %351 = vmatprep.subr.mxu0 0.0
    %352 = vmatpush1.msra.mxu0 0.0
    %353 = vmatprep.subr.mxu0 0.0
    %354 = vmatpush1.msra.mxu0 0.0
    %355 = vmatprep.subr.mxu0 0.0
    %356 = vmatpush1.msra.mxu0 0.0
    %357 = vmatprep.subr.mxu0 0.0
    %358 = vmatpush1.msra.mxu0 0.0
    %359 = vmatprep.subr.mxu0 0.0
    %360 = vmatpush1.msra.mxu0 0.0
    %361 = vmatprep.subr.mxu0 0.0
    %362 = vmatpush1.msra.mxu0 0.0
    %363 = vmatprep.subr.mxu0 0.0
    %364 = vmatpush1.msra.mxu0 0.0
    %365 = vmatprep.subr.mxu0 0.0
    %366 = vmatpush1.msra.mxu0 0.0
    %367 = vmatprep.subr.mxu0 0.0
    %368 = vmatpush1.msra.mxu0 0.0
    %369 = vmatprep.subr.mxu0 0.0
    %370 = vmatpush1.msra.mxu0 0.0
    %371 = vmatprep.subr.mxu0 0.0
    %372 = vmatpush1.msra.mxu0 0.0
    %373 = vmatprep.subr.mxu0 0.0
    %374 = vmatpush1.msra.mxu0 0.0
    %375 = vmatprep.subr.mxu0 0.0
    %376 = vmatpush1.msra.mxu0 0.0
    %377 = vmatprep.subr.mxu0 0.0
    %378 = vmatpush1.msra.mxu0 0.0
    %379 = vmatprep.subr.mxu0 0.0
    %380 = vmatpush1.msra.mxu0 0.0
    %381 = vmatprep.subr.mxu0 0.0
    %382 = vmatpush1.msra.mxu0 0.0
    %383 = vmatprep.subr.mxu0 0.0
    %384 = vmatpush1.msra.mxu0 0.0
    %385 = vmatprep.subr.mxu0 0.0
    %386 = vmatpush1.msra.mxu0 0.0
    %387 = vmatprep.subr.mxu0 0.0
    %388 = vmatpush1.msra.mxu0 0.0
    %389 = vmatprep.mubr.f32.mxu0 0.0
    %390 = vmatmul.mubr.f32.gmra.mrb[0].mxu0 %v323
    %v391 = vpop.f32.mrb[0].mxu0
    %v392 = vadd.f32 0.0, %v391
    %v393 = vpop.f32.mrb[0].mxu0
    %394 = vdwg.mxu0
    %395 = vrot.lane.b32.xlu0 %v125, 96
    %v396 = vpop.permute.xlu0 %395
    %v399 = vsel %vm296, %v318, 0
    %401 = vmatprep.subr.mxu0 0.0
    %402 = vmatpush1.msra.mxu0 %v396
    %403 = vmatprep.subr.mxu0 0.0
    %404 = vmatpush1.msra.mxu0 0.0
    %405 = vmatprep.subr.mxu0 0.0
    %406 = vmatpush1.msra.mxu0 0.0
    %407 = vmatprep.subr.mxu0 0.0
    %408 = vmatpush1.msra.mxu0 0.0
    %409 = vmatprep.subr.mxu0 0.0
    %410 = vmatpush1.msra.mxu0 0.0
    %411 = vmatprep.subr.mxu0 0.0
    %412 = vmatpush1.msra.mxu0 0.0
    %413 = vmatprep.subr.mxu0 0.0
    %414 = vmatpush1.msra.mxu0 0.0
    %415 = vmatprep.subr.mxu0 0.0
    %416 = vmatpush1.msra.mxu0 0.0
    %417 = vmatprep.subr.mxu0 0.0
    %418 = vmatpush1.msra.mxu0 0.0
    %419 = vmatprep.subr.mxu0 0.0
    %420 = vmatpush1.msra.mxu0 0.0
    %421 = vmatprep.subr.mxu0 0.0
    %422 = vmatpush1.msra.mxu0 0.0
    %423 = vmatprep.subr.mxu0 0.0
    %424 = vmatpush1.msra.mxu0 0.0
    %425 = vmatprep.subr.mxu0 0.0
    %426 = vmatpush1.msra.mxu0 0.0
    %427 = vmatprep.subr.mxu0 0.0
    %428 = vmatpush1.msra.mxu0 0.0
    %429 = vmatprep.subr.mxu0 0.0
    %430 = vmatpush1.msra.mxu0 0.0
    %431 = vmatprep.subr.mxu0 0.0
    %432 = vmatpush1.msra.mxu0 0.0
    %433 = vmatprep.subr.mxu0 0.0
    %434 = vmatpush1.msra.mxu0 0.0
    %435 = vmatprep.subr.mxu0 0.0
    %436 = vmatpush1.msra.mxu0 0.0
    %437 = vmatprep.subr.mxu0 0.0
    %438 = vmatpush1.msra.mxu0 0.0
    %439 = vmatprep.subr.mxu0 0.0
    %440 = vmatpush1.msra.mxu0 0.0
    %441 = vmatprep.subr.mxu0 0.0
    %442 = vmatpush1.msra.mxu0 0.0
    %443 = vmatprep.subr.mxu0 0.0
    %444 = vmatpush1.msra.mxu0 0.0
    %445 = vmatprep.subr.mxu0 0.0
    %446 = vmatpush1.msra.mxu0 0.0
    %447 = vmatprep.subr.mxu0 0.0
    %448 = vmatpush1.msra.mxu0 0.0
    %449 = vmatprep.subr.mxu0 0.0
    %450 = vmatpush1.msra.mxu0 0.0
    %451 = vmatprep.subr.mxu0 0.0
    %452 = vmatpush1.msra.mxu0 0.0
    %453 = vmatprep.subr.mxu0 0.0
    %454 = vmatpush1.msra.mxu0 0.0
    %455 = vmatprep.subr.mxu0 0.0
    %456 = vmatpush1.msra.mxu0 0.0
    %457 = vmatprep.subr.mxu0 0.0
    %458 = vmatpush1.msra.mxu0 0.0
    %459 = vmatprep.subr.mxu0 0.0
    %460 = vmatpush1.msra.mxu0 0.0
    %461 = vmatprep.subr.mxu0 0.0
    %462 = vmatpush1.msra.mxu0 0.0
    %463 = vmatprep.subr.mxu0 0.0
    %464 = vmatpush1.msra.mxu0 0.0
    %465 = vmatprep.mubr.f32.mxu0 0.0
    %466 = vmatmul.mubr.f32.gmra.mrb[0].mxu0 %v399
    %v467 = vpop.f32.mrb[0].mxu0
    %v468 = vadd.f32 0.0, %v467
    %v469 = vpop.f32.mrb[0].mxu0
    %470 = vdwg.mxu0
    %471 = vst.msk [vmem:[#allocation7] sm:$0xff] %vm133, %v392
    %472 = vst.msk [vmem:[#allocation7 + $0x8] sm:$0xff] %vm133, %v468
    // Predicated region
    $region18: #{tpu_custom_call.1} parent=1 // pred_check
      _
    $region19: #{tpu_custom_call.1} parent=1 // pred_check_branch
      %474 = sbr.rel (0) target = $region21
    $region20: #{tpu_custom_call.1} parent=1 // pred_region
      %s476 = ssub.s32 256, 256
      %477 = vsyncadd [#allocation4], %s476
      %s478 = sshll.u32 [#allocation7], 4
      %s479 = int_to_ptr.vmem [resolvable:$true] %s478
      %484 = dma.vmem_to_hbm [thread:$0]  %s479, 256, %s2, [#allocation4], 128, 128, 8
    $region21: #{tpu_custom_call.1} parent=1 // pred_fallthru
      _
    // Predicated region
    $region22: #{tpu_custom_call.1} parent=1 // pred_check
      _
    $region23: #{tpu_custom_call.1} parent=1 // pred_check_branch
      %486 = sbr.rel (0) target = $region25
    $region24: #{tpu_custom_call.1} parent=1 // pred_region
      %487 = dma.done [#allocation4], 256
    $region25: #{tpu_custom_call.1} parent=1 // pred_fallthru
      _
    %488 = vsyncpa [#allocation3], 1
    %489 = vsyncpa [#allocation6], 1
    %490 = vsyncpa [#allocation4], 1

</llo_original>
